<compile_context>
chip_gen: v7x
topology: tpu7x:2x2x1
jax: 0.10.0
libtpu: 0.0.40
codegen_flags: <defaults>
</compile_context>

<pallas_src>
import jax
import jax.numpy as jnp
from jax.experimental import pallas as pl
from jax.experimental.pallas import tpu as pltpu

LN_EPS = 1e-5  # torch.nn.LayerNorm default


def _round_up(x, m):
    return ((x + m - 1) // m) * m


def prenorm_linear_kernel(x_ref, w_ref, b_ref, o_ref):
    # x_ref: (tile_rows, D) block of flattened tokens (original dtype)
    x = x_ref[...].astype(jnp.float32)

    # --- LayerNorm statistics over last dim (f32) ---
    mean = jnp.mean(x, axis=-1, keepdims=True)
    xc = x - mean
    var = jnp.mean(xc * xc, axis=-1, keepdims=True)
    inv = jax.lax.rsqrt(var + LN_EPS)

    # Normalized activations, cast to the weight dtype (bf16) for the MXU.
    # gamma/beta are pre-folded into w_ref / b_ref by the wrapper.
    yn = (xc * inv).astype(w_ref.dtype)                     # (tile_rows, D)

    # --- fn = Linear: yn @ W' + b'  (f32 accumulation) ---
    out = jnp.dot(yn, w_ref[...], preferred_element_type=jnp.float32)
    out = out + b_ref[...]
    o_ref[...] = out.astype(o_ref.dtype)


def prenorm_linear(x, gamma, beta, w, b, *, tile_rows=256, tile_n=512):
    """PreNorm(dim, Linear(D, D_out), 'ln') forward.

    x: (B, N, D); gamma/beta: (D,); w: (D_out, D_in) torch-style; b: (D_out,).
    """
    B, N, D = x.shape
    D_out = w.shape[0]
    rows = B * N

    # --- Fold LayerNorm affine into the Linear (pure algebra, f32) ---
    #   LN(x) @ W^T + b = (xc*inv) @ (diag(gamma) @ W^T) + (beta @ W^T + b)
    wT = w.T.astype(jnp.float32)                               # (D, D_out)
    w_folded = gamma.astype(jnp.float32)[:, None] * wT         # (D, D_out)
    b_folded = b.astype(jnp.float32) + beta.astype(jnp.float32) @ wT

    # bf16 weights for the MXU (f32 accumulation preserved in-kernel).
    w_folded = w_folded.astype(jnp.bfloat16)

    # --- Padding / tiling ---
    tile_rows = max(8, tile_rows)
    rows_pad = _round_up(rows, tile_rows)

    tile_n = min(tile_n, _round_up(D_out, 128))   # lane-dense output blocks
    dout_pad = _round_up(D_out, tile_n)

    x2 = x.reshape(rows, D)
    if rows_pad != rows:
        x2 = jnp.pad(x2, ((0, rows_pad - rows), (0, 0)))
    if dout_pad != D_out:
        w_folded = jnp.pad(w_folded, ((0, 0), (0, dout_pad - D_out)))
        b_folded = jnp.pad(b_folded, (0, dout_pad - D_out))
    b2 = b_folded.reshape(1, dout_pad)

    grid = (rows_pad // tile_rows, dout_pad // tile_n)

    # Rough VMEM budget: double-buffered x/out blocks + resident weight/bias.
    x_bytes = tile_rows * D * x2.dtype.itemsize
    o_bytes = tile_rows * tile_n * x.dtype.itemsize
    w_bytes = D * tile_n * 2
    b_bytes = tile_n * 4
    needed = 2 * (x_bytes + o_bytes + w_bytes + b_bytes)
    vmem_limit = int(min(max(3 * needed, 16 << 20), 48 << 20))

    out = pl.pallas_call(
        prenorm_linear_kernel,
        out_shape=jax.ShapeDtypeStruct((rows_pad, dout_pad), x.dtype),
        grid_spec=pltpu.PrefetchScalarGridSpec(
            num_scalar_prefetch=0,
            grid=grid,
            in_specs=[
                pl.BlockSpec((tile_rows, D), lambda i, j: (i, 0)),
                pl.BlockSpec((D, tile_n), lambda i, j: (0, j)),
                pl.BlockSpec((1, tile_n), lambda i, j: (0, j)),
            ],
            out_specs=pl.BlockSpec((tile_rows, tile_n), lambda i, j: (i, j)),
        ),
        compiler_params=pltpu.CompilerParams(
            dimension_semantics=("parallel", "parallel"),
            vmem_limit_bytes=vmem_limit,
        ),
    )(x2, w_folded, b2)

    return out[:rows, :D_out].reshape(B, N, D_out)


def prenorm_linear_ref(x, gamma, beta, w, b):
    x = x.astype(jnp.float32)
    mean = jnp.mean(x, axis=-1, keepdims=True)
    var = jnp.mean((x - mean) ** 2, axis=-1, keepdims=True)
    y = (x - mean) / jnp.sqrt(var + LN_EPS) * gamma + beta
    return y @ w.T.astype(jnp.float32) + b


if __name__ == "__main__":
    key = jax.random.PRNGKey(0)
    # ViT-like small shape: 197 tokens (CLS + 14x14 patches), lane-dense D.
    B, N, D = 2, 197, 128
    D_out = D

    k_x, k_w, k_b, k_g, k_be = jax.random.split(key, 5)
    x = jax.random.normal(k_x, (B, N, D), dtype=jnp.float32)

    # Non-trivial LayerNorm affine params (exercise the folding path).
    gamma = 1.0 + 0.1 * jax.random.normal(k_g, (D,), dtype=jnp.float32)
    beta = 0.1 * jax.random.normal(k_be, (D,), dtype=jnp.float32)

    # fn = Linear(D, D_out) with deterministic synthetic weights.
    w = jax.random.normal(k_w, (D_out, D), dtype=jnp.float32) * 0.05
    b = jax.random.normal(k_b, (D_out,), dtype=jnp.float32) * 0.01

    out = prenorm_linear(x, gamma, beta, w, b)
    out = jax.block_until_ready(out)

    ref = prenorm_linear_ref(x, gamma, beta, w, b)
    assert out.shape == (B, N, D_out)
    # bf16 MXU operands (f32 accumulation) -> loosened tolerance vs f32 ref.
    assert jnp.allclose(out, ref, atol=2e-2, rtol=2e-2), "mismatch vs reference"

    print("KERNEL_OK")
</pallas_src>

<mosaic_0001>
module attributes {stable_mosaic.version = 11 : i64} {
  func.func @prenorm_linear_kernel(%arg0: i32, %arg1: i32, %arg2: memref<256x128xf32, #tpu.memory_space<vmem>>, %arg3: memref<128x128xbf16, #tpu.memory_space<vmem>>, %arg4: memref<1x128xf32, #tpu.memory_space<vmem>>, %arg5: memref<256x128xf32, #tpu.memory_space<vmem>>) attributes {dimension_semantics = [#tpu.dimension_semantics<parallel>, #tpu.dimension_semantics<parallel>], iteration_bounds = array<i64: 2, 1>, scalar_prefetch = 0 : i64, scratch_operands = 0 : i64, tpu.core_type = #tpu.core_type<tc>, window_params = [{transform_indices = @transform_0, window_bounds = array<i64: 256, 128>}, {transform_indices = @transform_1, window_bounds = array<i64: 128, 128>}, {transform_indices = @transform_2, window_bounds = array<i64: 1, 128>}, {transform_indices = @transform_3, window_bounds = array<i64: 256, 128>}]} {
    %c0 = arith.constant 0 : index
    %c0_0 = arith.constant 0 : index
    %0 = vector.load %arg2[%c0, %c0_0] : memref<256x128xf32, #tpu.memory_space<vmem>>, vector<256x128xf32>
    %cst = arith.constant dense<0.000000e+00> : vector<256xf32>
    %1 = vector.multi_reduction <add>, %0, %cst [1] : vector<256x128xf32> to vector<256xf32>
    %2 = vector.shape_cast %1 : vector<256xf32> to vector<256x1xf32>
    %cst_1 = arith.constant 1.280000e+02 : f32
    %3 = vector.broadcast %cst_1 : f32 to vector<256x1xf32>
    %4 = arith.divf %2, %3 : vector<256x1xf32>
    %5 = vector.broadcast %4 : vector<256x1xf32> to vector<256x128xf32>
    %6 = arith.subf %0, %5 : vector<256x128xf32>
    %7 = arith.mulf %6, %6 : vector<256x128xf32>
    %cst_2 = arith.constant dense<0.000000e+00> : vector<256xf32>
    %8 = vector.multi_reduction <add>, %7, %cst_2 [1] : vector<256x128xf32> to vector<256xf32>
    %9 = vector.shape_cast %8 : vector<256xf32> to vector<256x1xf32>
    %cst_3 = arith.constant 1.280000e+02 : f32
    %10 = vector.broadcast %cst_3 : f32 to vector<256x1xf32>
    %11 = arith.divf %9, %10 : vector<256x1xf32>
    %cst_4 = arith.constant 9.99999974E-6 : f32
    %12 = vector.broadcast %cst_4 : f32 to vector<256x1xf32>
    %13 = arith.addf %11, %12 : vector<256x1xf32>
    %14 = math.rsqrt %13 : vector<256x1xf32>
    %15 = vector.broadcast %14 : vector<256x1xf32> to vector<256x128xf32>
    %16 = arith.mulf %6, %15 : vector<256x128xf32>
    %17 = arith.truncf %16 : vector<256x128xf32> to vector<256x128xbf16>
    %c0_5 = arith.constant 0 : index
    %c0_6 = arith.constant 0 : index
    %18 = vector.load %arg3[%c0_5, %c0_6] : memref<128x128xbf16, #tpu.memory_space<vmem>>, vector<128x128xbf16>
    %cst_7 = arith.constant dense<0.000000e+00> : vector<256x128xf32>
    %19 = tpu.matmul %17, %18, %cst_7 {dimension_numbers = #tpu.dot_dimension_numbers<[1], [0], [0], [1], [0, 0, 1, 1], [], []>} : vector<256x128xbf16>, vector<128x128xbf16>, vector<256x128xf32> -> vector<256x128xf32>
    %c0_8 = arith.constant 0 : index
    %c0_9 = arith.constant 0 : index
    %20 = vector.load %arg4[%c0_8, %c0_9] : memref<1x128xf32, #tpu.memory_space<vmem>>, vector<1x128xf32>
    %21 = vector.broadcast %20 : vector<1x128xf32> to vector<256x128xf32>
    %22 = arith.addf %19, %21 : vector<256x128xf32>
    %c0_10 = arith.constant 0 : index
    %c0_11 = arith.constant 0 : index
    %23 = vector.load %arg5[%c0_10, %c0_11] : memref<256x128xf32, #tpu.memory_space<vmem>>, vector<256x128xf32>
    tpu.vector_store %arg5[%c0_10, %c0_11], %22 {strides = array<i32>} : memref<256x128xf32, #tpu.memory_space<vmem>>, vector<256x128xf32>,
    return
  }
  func.func @transform_0(%arg0: i32, %arg1: i32) -> (i32, i32) {
    %c0_i32 = arith.constant 0 : i32
    %c0_i32_0 = arith.constant 0 : i32
    return %arg0, %c0_i32 : i32, i32
  }
  func.func @transform_1(%arg0: i32, %arg1: i32) -> (i32, i32) {
    %c0_i32 = arith.constant 0 : i32
    %c0_i32_0 = arith.constant 0 : i32
    return %c0_i32, %arg1 : i32, i32
  }
  func.func @transform_2(%arg0: i32, %arg1: i32) -> (i32, i32) {
    %c0_i32 = arith.constant 0 : i32
    %c0_i32_0 = arith.constant 0 : i32
    return %c0_i32, %arg1 : i32, i32
  }
  func.func @transform_3(%arg0: i32, %arg1: i32) -> (i32, i32) {
    %c0_i32 = arith.constant 0 : i32
    return %arg0, %arg1 : i32, i32
  }
}

</mosaic_0001>

<llo_original>
// kernel: tpu_custom_call.1
$region0: #{tpu_custom_call.1}
  #allocation0 [shape = 'u32[]', space=smem, size = 0x4, offset = 0x4, fixed_abs, tag = 'smem constant byte address 0x4 - core index']
  #allocation1 [shape = 'u32[144,128]{1,0:T(1,128)}', space=vmem, size = 0x12000, scoped, tag = 'internal scratch']
  %s0 = inlined_call_operand.hbm [shape: f32[512,128], index: 0, kind: input, shape index: {}]
  %s1 = inlined_call_operand.hbm [shape: bf16[128,128], index: 1, kind: input, shape index: {}]
  %s2 = inlined_call_operand.vmem [shape: f32[1,128], index: 2, kind: input, shape index: {}]
  %s3 = inlined_call_operand.hbm [shape: f32[512,128], index: 3, kind: output, shape index: {}]
  %s4 = sld [smem:[#allocation0]]
  $region53: #{tpu_custom_call.1} parent=0
    _
  %s6 = ssub.s32 1, %s4
  %s7 = scalar_select 0, %s6, %s4
  $region1: #{tpu_custom_call.1} parent=0
    #allocation2 [shape = 'u8[262144]{0}', space=vmem, size = 0x40000, scoped, tag = 'input window, operand 0']
    #allocation3 [shape = 's32[2]{0}', space=sflag, size = 0x8, scoped, tag = 'scoped memory for tpu_custom_call.1']
    #allocation4 [shape = 's32[2]{0}', space=sflag, size = 0x8, scoped, tag = 'scoped memory for tpu_custom_call.1']
    #allocation5 [shape = 'u8[32768]{0}', space=vmem, size = 0x8000, scoped, tag = 'input window, operand 1, single buffered']
    #allocation6 [shape = 's32[1]{0}', space=sflag, size = 0x4, scoped, tag = 'scoped memory for tpu_custom_call.1']
    #allocation7 [shape = 'u8[262144]{0}', space=vmem, size = 0x40000, scoped, tag = 'output window, operand 0']
    %8 = vsyncpa [#allocation3], 0
    %s9 = scalar_lea.sflag [#allocation3], 1
    %10 = vsyncpa %s9, 0
    %11 = vsyncpa [#allocation6], 0
    %12 = vsyncpa [#allocation4], 0
    %s13 = scalar_lea.sflag [#allocation4], 1
    %14 = vsyncpa %s13, 0
    loop: start=0, step=1, limit=4
    $region2: #{tpu_custom_call.1} parent=1 // loop_pre_header
      _
    $region3: #{tpu_custom_call.1} parent=1 // loop_header
      %s16 = sphi 0, %s20
      %p17 = scmp.ge.s32.totalorder %s16, 4
      %s23 = sphi 0, %s35
      %s24 = sphi 0, %s31
      %s25 = sphi 0, %s23
      %s26 = sphi 0, %s24
      %s27 = sphi 0, %s25
      %s28 = sphi 0, %s26
      %s38 = sphi 0, %s40
      %s41 = sphi 0, %s38
      %s42 = sphi 0, %s41
      %s58 = sphi 0, %s42
      %s64 = sphi 0, %s66
      %s67 = sphi 0, %s64
      %s68 = sphi 0, %s67
      %s84 = sphi 0, %s68
      %s90 = sphi 0, %s92
      %s93 = sphi 0, %s90
      %s94 = sphi 0, %s93
      %s110 = sphi 0, %s94
      %s118 = sphi 0, %s120
      %s121 = sphi 0, %s118
      %s122 = sphi 0, %s121
      %s138 = sphi 0, %s122
    $region4: #{tpu_custom_call.1} parent=1 // loop_header_branch
      %19 = sbr.rel (%p17) target = $region8
    $region5: #{tpu_custom_call.1} parent=1 // loop_body
      %s21 = ssub.s32 %s16, 1
      %s22 = ssub.s32 %s16, 2
      %s29 = sadd.s32 1, %s24
      %p30 = scmp.ge.s32.totalorder %s29, 1
      %s31 = scalar_select %p30, 0, %s29
      %s32 = sadd.s32 1, %s23
      %s33 = scalar_select %p30, %s32, %s23
      %p34 = scmp.ge.s32.totalorder %s33, 2
      %s35 = scalar_select %p34, 0, %s33
      %s36 = ssub.s32 %s23, %s35
      %p37 = scmp.eq.s32.totalorder %s36, 0
      %s39 = sadd.s32 %s38, 1
      %s40 = scalar_select %p37, %s38, %s39
      %p43 = pneg %p37
      %p44 = scmp.eq.s32.totalorder %s16, 1
      %p45 = por %p43, %p44
      %p46 = scmp.ne.s32.totalorder %s38, %s41
      %p47 = scmp.eq.s32.totalorder %s16, 0
      %p48 = por %p46, %p47
      %p49 = scmp.ne.s32.totalorder %s38, %s41
      %p50 = scmp.eq.s32.totalorder %s21, 1
      %p51 = por %p49, %p50
      %p52 = scmp.ne.s32.totalorder %s41, %s42
      %p53 = scmp.eq.s32.totalorder %s21, 0
      %p54 = por %p52, %p53
      %p55 = scmp.ne.s32.totalorder %s41, %s42
      %p56 = scmp.eq.s32.totalorder %s22, 1
      %p57 = por %p55, %p56
      %p59 = scmp.ne.s32.totalorder %s42, %s58
      %p60 = scmp.eq.s32.totalorder %s22, 0
      %p61 = por %p59, %p60
      %s62 = ssub.s32 %s24, %s31
      %p63 = scmp.eq.s32.totalorder %s62, 0
      %s65 = sadd.s32 %s64, 1
      %s66 = scalar_select %p63, %s64, %s65
      %p69 = pneg %p63
      %p70 = scmp.eq.s32.totalorder %s16, 1
      %p71 = por %p69, %p70
      %p72 = scmp.ne.s32.totalorder %s64, %s67
      %p73 = scmp.eq.s32.totalorder %s16, 0
      %p74 = por %p72, %p73
      %p75 = scmp.ne.s32.totalorder %s64, %s67
      %p76 = scmp.eq.s32.totalorder %s21, 1
      %p77 = por %p75, %p76
      %p78 = scmp.ne.s32.totalorder %s67, %s68
      %p79 = scmp.eq.s32.totalorder %s21, 0
      %p80 = por %p78, %p79
      %p81 = scmp.ne.s32.totalorder %s67, %s68
      %p82 = scmp.eq.s32.totalorder %s22, 1
      %p83 = por %p81, %p82
      %p85 = scmp.ne.s32.totalorder %s68, %s84
      %p86 = scmp.eq.s32.totalorder %s22, 0
      %p87 = por %p85, %p86
      %s88 = ssub.s32 %s24, %s31
      %p89 = scmp.eq.s32.totalorder %s88, 0
      %s91 = sadd.s32 %s90, 1
      %s92 = scalar_select %p89, %s90, %s91
      %p95 = pneg %p89
      %p96 = scmp.eq.s32.totalorder %s16, 1
      %p97 = por %p95, %p96
      %p98 = scmp.ne.s32.totalorder %s90, %s93
      %p99 = scmp.eq.s32.totalorder %s16, 0
      %p100 = por %p98, %p99
      %p101 = scmp.ne.s32.totalorder %s90, %s93
      %p102 = scmp.eq.s32.totalorder %s21, 1
      %p103 = por %p101, %p102
      %p104 = scmp.ne.s32.totalorder %s93, %s94
      %p105 = scmp.eq.s32.totalorder %s21, 0
      %p106 = por %p104, %p105
      %p107 = scmp.ne.s32.totalorder %s93, %s94
      %p108 = scmp.eq.s32.totalorder %s22, 1
      %p109 = por %p107, %p108
      %p111 = scmp.ne.s32.totalorder %s94, %s110
      %p112 = scmp.eq.s32.totalorder %s22, 0
      %p113 = por %p111, %p112
      %s114 = ssub.s32 %s23, %s35
      %s115 = ssub.s32 %s24, %s31
      %s116 = sor.u32 %s114, %s115
      %p117 = scmp.eq.s32.totalorder %s116, 0
      %s119 = sadd.s32 %s118, 1
      %s120 = scalar_select %p117, %s118, %s119
      %p123 = pneg %p117
      %p124 = scmp.eq.s32.totalorder %s16, 1
      %p125 = por %p123, %p124
      %p126 = scmp.ne.s32.totalorder %s118, %s121
      %p127 = scmp.eq.s32.totalorder %s16, 0
      %p128 = por %p126, %p127
      %p129 = scmp.ne.s32.totalorder %s118, %s121
      %p130 = scmp.eq.s32.totalorder %s21, 1
      %p131 = por %p129, %p130
      %p132 = scmp.ne.s32.totalorder %s121, %s122
      %p133 = scmp.eq.s32.totalorder %s21, 0
      %p134 = por %p132, %p133
      %p135 = scmp.ne.s32.totalorder %s121, %s122
      %p136 = scmp.eq.s32.totalorder %s22, 1
      %p137 = por %p135, %p136
      %p139 = scmp.ne.s32.totalorder %s122, %s138
      %p140 = scmp.eq.s32.totalorder %s22, 0
      %p141 = por %p139, %p140
      %p142 = scmp.le.s32.totalorder 1, %s16
      %p143 = scmp.lt.s32.totalorder %s16, 3
      %p144 = pnand %p142, %p143
      %p145 = pneg %p144
      // Predicated region
      $region9: #{tpu_custom_call.1} parent=5 // pred_check
        _
      $region10: #{tpu_custom_call.1} parent=5 // pred_check_branch
        %147 = sbr.rel (%p144) target = $region12
      $region11: #{tpu_custom_call.1} parent=5 // pred_region
        %s148 = ssub.s32 %s16, 1
        // Predicated region
        $region13: #{tpu_custom_call.1} parent=11 // pred_check
          %p149 = pneg %p80
        $region14: #{tpu_custom_call.1} parent=11 // pred_check_branch
          %151 = sbr.rel (%p149) target = $region16
        $region15: #{tpu_custom_call.1} parent=11 // pred_region
          %s153 = ssub.s32 1024, 1024
          %154 = vsyncadd [#allocation6], %s153
          %s155 = smul.addr %s26, 64
          %s156 = scalar_lea.hbm %s1, %s155
          %s157 = sshll.u32 [#allocation5], 4
          %s158 = int_to_ptr.vmem [resolvable:$true] %s157
          %163 = dma.hbm_to_vmem [thread:$0]  %s156, 1024, %s158, [#allocation6], 64, 64, 4
        $region16: #{tpu_custom_call.1} parent=11 // pred_fallthru
          _
        // Predicated region
        $region17: #{tpu_custom_call.1} parent=11 // pred_check
          %p164 = pneg %p106
        $region18: #{tpu_custom_call.1} parent=11 // pred_check_branch
          %166 = sbr.rel (%p164) target = $region20
        $region19: #{tpu_custom_call.1} parent=11 // pred_region
          %p167 = scmp.lt.s32.totalorder %s26, 0
          %s168 = scalar_select %p167, %s26, 0
          %s169 = scalar_lea.vmem %s2, %s168
        $region20: #{tpu_custom_call.1} parent=11 // pred_fallthru
          _
      $region12: #{tpu_custom_call.1} parent=5 // pred_fallthru
        _
      %p170 = scmp.lt.s32.totalorder %s16, 2
      // Predicated region
      $region21: #{tpu_custom_call.1} parent=5 // pred_check
        %p171 = pneg %p170
      $region22: #{tpu_custom_call.1} parent=5 // pred_check_branch
        %173 = sbr.rel (%p171) target = $region24
      $region23: #{tpu_custom_call.1} parent=5 // pred_region
        // Predicated region
        $region25: #{tpu_custom_call.1} parent=23 // pred_check
          %p174 = pneg %p48
        $region26: #{tpu_custom_call.1} parent=23 // pred_check_branch
          %176 = sbr.rel (%p174) target = $region28
        $region27: #{tpu_custom_call.1} parent=23 // pred_region
          %s177 = sand.u32 %s38, 1
          %s178 = scalar_lea.sflag [#allocation3], %s177
          %s179 = sand.u32 %s38, 1
          %s180 = smul.addr %s179, 256
          %s181 = scalar_lea.vmem [#allocation2], %s180
          %s182 = smul.u32 32, %s23
          %s184 = ssub.s32 4096, 4096
          %185 = vsyncadd %s178, %s184
          %s186 = smul.addr %s182, 128
          %s187 = scalar_lea.hbm %s0, %s186
          %s188 = sshll.u32 %s181, 4
          %s189 = int_to_ptr.vmem [resolvable:$true] %s188
          %194 = dma.hbm_to_vmem [thread:$0]  %s187, 4096, %s189, %s178, 128, 128, 8
        $region28: #{tpu_custom_call.1} parent=23 // pred_fallthru
          _
      $region24: #{tpu_custom_call.1} parent=5 // pred_fallthru
        _
      %p195 = scmp.le.s32.totalorder 1, %s16
      %p196 = scmp.lt.s32.totalorder %s16, 3
      %p197 = pnand %p195, %p196
      %p198 = pneg %p197
      // Predicated region
      $region29: #{tpu_custom_call.1} parent=5 // pred_check
        _
      $region30: #{tpu_custom_call.1} parent=5 // pred_check_branch
        %200 = sbr.rel (%p197) target = $region32
      $region31: #{tpu_custom_call.1} parent=5 // pred_region
        %s201 = ssub.s32 %s16, 1
        %s202 = sand.u32 %s41, 1
        %s203 = scalar_lea.sflag [#allocation3], %s202
        %s204 = sand.u32 %s41, 1
        %s205 = smul.addr %s204, 256
        %s206 = scalar_lea.vmem [#allocation2], %s205
        // Predicated region
        $region33: #{tpu_custom_call.1} parent=31 // pred_check
          %p207 = pneg %p54
        $region34: #{tpu_custom_call.1} parent=31 // pred_check_branch
          %209 = sbr.rel (%p207) target = $region36
        $region35: #{tpu_custom_call.1} parent=31 // pred_region
          %210 = dma.done %s203, 4096
        $region36: #{tpu_custom_call.1} parent=31 // pred_fallthru
          _
        // Predicated region
        $region37: #{tpu_custom_call.1} parent=31 // pred_check
          %p211 = pneg %p80
        $region38: #{tpu_custom_call.1} parent=31 // pred_check_branch
          %213 = sbr.rel (%p211) target = $region40
        $region39: #{tpu_custom_call.1} parent=31 // pred_region
          %214 = dma.done [#allocation6], 1024
        $region40: #{tpu_custom_call.1} parent=31 // pred_fallthru
          _
        %s215 = sand.u32 %s41, 1
        %s216 = scalar_lea.sflag [#allocation3], %s215
        %s217 = sand.u32 %s41, 1
        %s218 = smul.addr %s217, 256
        %s219 = scalar_lea.vmem [#allocation2], %s218
        %p220 = pneg %p54
        %p221 = pneg %p51
        %p222 = pneg %p80
        %p223 = pneg %p77
        %p224 = scmp.lt.s32.totalorder %s26, 0
        %s225 = scalar_select %p224, %s26, 0
        %s226 = scalar_lea.vmem %s2, %s225
        %p227 = pneg %p106
        %p228 = pneg %p103
        %p229 = pneg %p134
        %p230 = pneg %p131
        %s231 = sand.u32 %s121, 1
        %s232 = scalar_lea.sflag [#allocation4], %s231
        %s233 = sand.u32 %s121, 1
        %s234 = smul.addr %s233, 256
        %s235 = scalar_lea.vmem [#allocation7], %s234
        %s236 = smul.u32 32, %s25
        %p237 = scmp.lt.s32.totalorder %s26, 0
        %s238 = scalar_select %p237, %s26, 0
        %s239 = scalar_lea.vmem %s2, %s238
        %s240 = smul.u32 32, %s25
        %v242 = vld [vmem:[%s206] sm:$0xff]
        %v243 = vld [vmem:[%s206 + $0x8] sm:$0xff]
        %v244 = vld [vmem:[%s206 + $0x10] sm:$0xff]
        %v245 = vld [vmem:[%s206 + $0x18] sm:$0xff]
        %v246 = vld [vmem:[%s206 + $0x20] sm:$0xff]
        %v247 = vld [vmem:[%s206 + $0x28] sm:$0xff]
        %v248 = vld [vmem:[%s206 + $0x30] sm:$0xff]
        %v249 = vld [vmem:[%s206 + $0x38] sm:$0xff]
        %v250 = vld [vmem:[%s206 + $0x40] sm:$0xff]
        %v251 = vld [vmem:[%s206 + $0x48] sm:$0xff]
        %v252 = vld [vmem:[%s206 + $0x50] sm:$0xff]
        %v253 = vld [vmem:[%s206 + $0x58] sm:$0xff]
        %v254 = vld [vmem:[%s206 + $0x60] sm:$0xff]
        %v255 = vld [vmem:[%s206 + $0x68] sm:$0xff]
        %v256 = vld [vmem:[%s206 + $0x70] sm:$0xff]
        %v257 = vld [vmem:[%s206 + $0x78] sm:$0xff]
        %v258 = vld [vmem:[%s206 + $0x80] sm:$0xff]
        %v259 = vld [vmem:[%s206 + $0x88] sm:$0xff]
        %v260 = vld [vmem:[%s206 + $0x90] sm:$0xff]
        %v261 = vld [vmem:[%s206 + $0x98] sm:$0xff]
        %v262 = vld [vmem:[%s206 + $0xa0] sm:$0xff]
        %v263 = vld [vmem:[%s206 + $0xa8] sm:$0xff]
        %v264 = vld [vmem:[%s206 + $0xb0] sm:$0xff]
        %v265 = vld [vmem:[%s206 + $0xb8] sm:$0xff]
        %v266 = vld [vmem:[%s206 + $0xc0] sm:$0xff]
        %v267 = vld [vmem:[%s206 + $0xc8] sm:$0xff]
        %v268 = vld [vmem:[%s206 + $0xd0] sm:$0xff]
        %v269 = vld [vmem:[%s206 + $0xd8] sm:$0xff]
        %v270 = vld [vmem:[%s206 + $0xe0] sm:$0xff]
        %v271 = vld [vmem:[%s206 + $0xe8] sm:$0xff]
        %v272 = vld [vmem:[%s206 + $0xf0] sm:$0xff]
        %v273 = vld [vmem:[%s206 + $0xf8] sm:$0xff]
        %274 = vadd.xlane.f32.xlu0 %v242
        %v275 = vpop.xlane.xlu0 %274
        %276 = vadd.xlane.f32.xlu0 %v243
        %v277 = vpop.xlane.xlu0 %276
        %278 = vadd.xlane.f32.xlu0 %v244
        %v279 = vpop.xlane.xlu0 %278
        %280 = vadd.xlane.f32.xlu0 %v245
        %v281 = vpop.xlane.xlu0 %280
        %282 = vadd.xlane.f32.xlu0 %v246
        %v283 = vpop.xlane.xlu0 %282
        %284 = vadd.xlane.f32.xlu0 %v247
        %v285 = vpop.xlane.xlu0 %284
        %286 = vadd.xlane.f32.xlu0 %v248
        %v287 = vpop.xlane.xlu0 %286
        %288 = vadd.xlane.f32.xlu0 %v249
        %v289 = vpop.xlane.xlu0 %288
        %290 = vadd.xlane.f32.xlu0 %v250
        %v291 = vpop.xlane.xlu0 %290
        %292 = vadd.xlane.f32.xlu0 %v251
        %v293 = vpop.xlane.xlu0 %292
        %294 = vadd.xlane.f32.xlu0 %v252
        %v295 = vpop.xlane.xlu0 %294
        %296 = vadd.xlane.f32.xlu0 %v253
        %v297 = vpop.xlane.xlu0 %296
        %298 = vadd.xlane.f32.xlu0 %v254
        %v299 = vpop.xlane.xlu0 %298
        %300 = vadd.xlane.f32.xlu0 %v255
        %v301 = vpop.xlane.xlu0 %300
        %302 = vadd.xlane.f32.xlu0 %v256
        %v303 = vpop.xlane.xlu0 %302
        %304 = vadd.xlane.f32.xlu0 %v257
        %v305 = vpop.xlane.xlu0 %304
        %306 = vadd.xlane.f32.xlu0 %v258
        %v307 = vpop.xlane.xlu0 %306
        %308 = vadd.xlane.f32.xlu0 %v259
        %v309 = vpop.xlane.xlu0 %308
        %310 = vadd.xlane.f32.xlu0 %v260
        %v311 = vpop.xlane.xlu0 %310
        %312 = vadd.xlane.f32.xlu0 %v261
        %v313 = vpop.xlane.xlu0 %312
        %314 = vadd.xlane.f32.xlu0 %v262
        %v315 = vpop.xlane.xlu0 %314
        %316 = vadd.xlane.f32.xlu0 %v263
        %v317 = vpop.xlane.xlu0 %316
        %318 = vadd.xlane.f32.xlu0 %v264
        %v319 = vpop.xlane.xlu0 %318
        %320 = vadd.xlane.f32.xlu0 %v265
        %v321 = vpop.xlane.xlu0 %320
        %322 = vadd.xlane.f32.xlu0 %v266
        %v323 = vpop.xlane.xlu0 %322
        %324 = vadd.xlane.f32.xlu0 %v267
        %v325 = vpop.xlane.xlu0 %324
        %326 = vadd.xlane.f32.xlu0 %v268
        %v327 = vpop.xlane.xlu0 %326
        %328 = vadd.xlane.f32.xlu0 %v269
        %v329 = vpop.xlane.xlu0 %328
        %330 = vadd.xlane.f32.xlu0 %v270
        %v331 = vpop.xlane.xlu0 %330
        %332 = vadd.xlane.f32.xlu0 %v271
        %v333 = vpop.xlane.xlu0 %332
        %334 = vadd.xlane.f32.xlu0 %v272
        %v335 = vpop.xlane.xlu0 %334
        %336 = vadd.xlane.f32.xlu0 %v273
        %v337 = vpop.xlane.xlu0 %336
        %v338 = vrcp.pop 128.0
        %v339 = vmul.f32 %v275, %v338
        %v340 = vmul.f32 %v277, %v338
        %v341 = vmul.f32 %v279, %v338
        %v342 = vmul.f32 %v281, %v338
        %v343 = vmul.f32 %v283, %v338
        %v344 = vmul.f32 %v285, %v338
        %v345 = vmul.f32 %v287, %v338
        %v346 = vmul.f32 %v289, %v338
        %v347 = vmul.f32 %v291, %v338
        %v348 = vmul.f32 %v293, %v338
        %v349 = vmul.f32 %v295, %v338
        %v350 = vmul.f32 %v297, %v338
        %v351 = vmul.f32 %v299, %v338
        %v352 = vmul.f32 %v301, %v338
        %v353 = vmul.f32 %v303, %v338
        %v354 = vmul.f32 %v305, %v338
        %v355 = vmul.f32 %v307, %v338
        %v356 = vmul.f32 %v309, %v338
        %v357 = vmul.f32 %v311, %v338
        %v358 = vmul.f32 %v313, %v338
        %v359 = vmul.f32 %v315, %v338
        %v360 = vmul.f32 %v317, %v338
        %v361 = vmul.f32 %v319, %v338
        %v362 = vmul.f32 %v321, %v338
        %v363 = vmul.f32 %v323, %v338
        %v364 = vmul.f32 %v325, %v338
        %v365 = vmul.f32 %v327, %v338
        %v366 = vmul.f32 %v329, %v338
        %v367 = vmul.f32 %v331, %v338
        %v368 = vmul.f32 %v333, %v338
        %v369 = vmul.f32 %v335, %v338
        %v370 = vmul.f32 %v337, %v338
        %v371 = vsub.f32 %v242, %v339
        %v372 = vsub.f32 %v243, %v340
        %v373 = vsub.f32 %v244, %v341
        %v374 = vsub.f32 %v245, %v342
        %v375 = vsub.f32 %v246, %v343
        %v376 = vsub.f32 %v247, %v344
        %v377 = vsub.f32 %v248, %v345
        %v378 = vsub.f32 %v249, %v346
        %v379 = vsub.f32 %v250, %v347
        %v380 = vsub.f32 %v251, %v348
        %v381 = vsub.f32 %v252, %v349
        %v382 = vsub.f32 %v253, %v350
        %v383 = vsub.f32 %v254, %v351
        %v384 = vsub.f32 %v255, %v352
        %v385 = vsub.f32 %v256, %v353
        %v386 = vsub.f32 %v257, %v354
        %v387 = vsub.f32 %v258, %v355
        %v388 = vsub.f32 %v259, %v356
        %v389 = vsub.f32 %v260, %v357
        %v390 = vsub.f32 %v261, %v358
        %v391 = vsub.f32 %v262, %v359
        %v392 = vsub.f32 %v263, %v360
        %v393 = vsub.f32 %v264, %v361
        %v394 = vsub.f32 %v265, %v362
        %v395 = vsub.f32 %v266, %v363
        %v396 = vsub.f32 %v267, %v364
        %v397 = vsub.f32 %v268, %v365
        %v398 = vsub.f32 %v269, %v366
        %v399 = vsub.f32 %v270, %v367
        %v400 = vsub.f32 %v271, %v368
        %v401 = vsub.f32 %v272, %v369
        %v402 = vsub.f32 %v273, %v370
        %v403 = vmul.f32 %v371, %v371
        %v404 = vmul.f32 %v372, %v372
        %v405 = vmul.f32 %v373, %v373
        %v406 = vmul.f32 %v374, %v374
        %v407 = vmul.f32 %v375, %v375
        %v408 = vmul.f32 %v376, %v376
        %v409 = vmul.f32 %v377, %v377
        %v410 = vmul.f32 %v378, %v378
        %v411 = vmul.f32 %v379, %v379
        %v412 = vmul.f32 %v380, %v380
        %v413 = vmul.f32 %v381, %v381
        %v414 = vmul.f32 %v382, %v382
        %v415 = vmul.f32 %v383, %v383
        %v416 = vmul.f32 %v384, %v384
        %v417 = vmul.f32 %v385, %v385
        %v418 = vmul.f32 %v386, %v386
        %v419 = vmul.f32 %v387, %v387
        %v420 = vmul.f32 %v388, %v388
        %v421 = vmul.f32 %v389, %v389
        %v422 = vmul.f32 %v390, %v390
        %v423 = vmul.f32 %v391, %v391
        %v424 = vmul.f32 %v392, %v392
        %v425 = vmul.f32 %v393, %v393
        %v426 = vmul.f32 %v394, %v394
        %v427 = vmul.f32 %v395, %v395
        %v428 = vmul.f32 %v396, %v396
        %v429 = vmul.f32 %v397, %v397
        %v430 = vmul.f32 %v398, %v398
        %v431 = vmul.f32 %v399, %v399
        %v432 = vmul.f32 %v400, %v400
        %v433 = vmul.f32 %v401, %v401
        %v434 = vmul.f32 %v402, %v402
        %435 = vadd.xlane.f32.xlu0 %v403
        %v436 = vpop.xlane.xlu0 %435
        %437 = vadd.xlane.f32.xlu0 %v404
        %v438 = vpop.xlane.xlu0 %437
        %439 = vadd.xlane.f32.xlu0 %v405
        %v440 = vpop.xlane.xlu0 %439
        %441 = vadd.xlane.f32.xlu0 %v406
        %v442 = vpop.xlane.xlu0 %441
        %443 = vadd.xlane.f32.xlu0 %v407
        %v444 = vpop.xlane.xlu0 %443
        %445 = vadd.xlane.f32.xlu0 %v408
        %v446 = vpop.xlane.xlu0 %445
        %447 = vadd.xlane.f32.xlu0 %v409
        %v448 = vpop.xlane.xlu0 %447
        %449 = vadd.xlane.f32.xlu0 %v410
        %v450 = vpop.xlane.xlu0 %449
        %451 = vadd.xlane.f32.xlu0 %v411
        %v452 = vpop.xlane.xlu0 %451
        %453 = vadd.xlane.f32.xlu0 %v412
        %v454 = vpop.xlane.xlu0 %453
        %455 = vadd.xlane.f32.xlu0 %v413
        %v456 = vpop.xlane.xlu0 %455
        %457 = vadd.xlane.f32.xlu0 %v414
        %v458 = vpop.xlane.xlu0 %457
        %459 = vadd.xlane.f32.xlu0 %v415
        %v460 = vpop.xlane.xlu0 %459
        %461 = vadd.xlane.f32.xlu0 %v416
        %v462 = vpop.xlane.xlu0 %461
        %463 = vadd.xlane.f32.xlu0 %v417
        %v464 = vpop.xlane.xlu0 %463
        %465 = vadd.xlane.f32.xlu0 %v418
        %v466 = vpop.xlane.xlu0 %465
        %467 = vadd.xlane.f32.xlu0 %v419
        %v468 = vpop.xlane.xlu0 %467
        %469 = vadd.xlane.f32.xlu0 %v420
        %v470 = vpop.xlane.xlu0 %469
        %471 = vadd.xlane.f32.xlu0 %v421
        %v472 = vpop.xlane.xlu0 %471
        %473 = vadd.xlane.f32.xlu0 %v422
        %v474 = vpop.xlane.xlu0 %473
        %475 = vadd.xlane.f32.xlu0 %v423
        %v476 = vpop.xlane.xlu0 %475
        %477 = vadd.xlane.f32.xlu0 %v424
        %v478 = vpop.xlane.xlu0 %477
        %479 = vadd.xlane.f32.xlu0 %v425
        %v480 = vpop.xlane.xlu0 %479
        %481 = vadd.xlane.f32.xlu0 %v426
        %v482 = vpop.xlane.xlu0 %481
        %483 = vadd.xlane.f32.xlu0 %v427
        %v484 = vpop.xlane.xlu0 %483
        %485 = vadd.xlane.f32.xlu0 %v428
        %v486 = vpop.xlane.xlu0 %485
        %487 = vadd.xlane.f32.xlu0 %v429
        %v488 = vpop.xlane.xlu0 %487
        %489 = vadd.xlane.f32.xlu0 %v430
        %v490 = vpop.xlane.xlu0 %489
        %491 = vadd.xlane.f32.xlu0 %v431
        %v492 = vpop.xlane.xlu0 %491
        %493 = vadd.xlane.f32.xlu0 %v432
        %v494 = vpop.xlane.xlu0 %493
        %495 = vadd.xlane.f32.xlu0 %v433
        %v496 = vpop.xlane.xlu0 %495
        %497 = vadd.xlane.f32.xlu0 %v434
        %v498 = vpop.xlane.xlu0 %497
        %v499 = vmul.f32 %v436, %v338
        %v500 = vmul.f32 %v438, %v338
        %v501 = vmul.f32 %v440, %v338
        %v502 = vmul.f32 %v442, %v338
        %v503 = vmul.f32 %v444, %v338
        %v504 = vmul.f32 %v446, %v338
        %v505 = vmul.f32 %v448, %v338
        %v506 = vmul.f32 %v450, %v338
        %v507 = vmul.f32 %v452, %v338
        %v508 = vmul.f32 %v454, %v338
        %v509 = vmul.f32 %v456, %v338
        %v510 = vmul.f32 %v458, %v338
        %v511 = vmul.f32 %v460, %v338
        %v512 = vmul.f32 %v462, %v338
        %v513 = vmul.f32 %v464, %v338
        %v514 = vmul.f32 %v466, %v338
        %v515 = vmul.f32 %v468, %v338
        %v516 = vmul.f32 %v470, %v338
        %v517 = vmul.f32 %v472, %v338
        %v518 = vmul.f32 %v474, %v338
        %v519 = vmul.f32 %v476, %v338
        %v520 = vmul.f32 %v478, %v338
        %v521 = vmul.f32 %v480, %v338
        %v522 = vmul.f32 %v482, %v338
        %v523 = vmul.f32 %v484, %v338
        %v524 = vmul.f32 %v486, %v338
        %v525 = vmul.f32 %v488, %v338
        %v526 = vmul.f32 %v490, %v338
        %v527 = vmul.f32 %v492, %v338
        %v528 = vmul.f32 %v494, %v338
        %v529 = vmul.f32 %v496, %v338
        %v530 = vmul.f32 %v498, %v338
        %v531 = vadd.f32 %v499, 1e-05
        %v532 = vadd.f32 %v500, 1e-05
        %v533 = vadd.f32 %v501, 1e-05
        %v534 = vadd.f32 %v502, 1e-05
        %v535 = vadd.f32 %v503, 1e-05
        %v536 = vadd.f32 %v504, 1e-05
        %v537 = vadd.f32 %v505, 1e-05
        %v538 = vadd.f32 %v506, 1e-05
        %v539 = vadd.f32 %v507, 1e-05
        %v540 = vadd.f32 %v508, 1e-05
        %v541 = vadd.f32 %v509, 1e-05
        %v542 = vadd.f32 %v510, 1e-05
        %v543 = vadd.f32 %v511, 1e-05
        %v544 = vadd.f32 %v512, 1e-05
        %v545 = vadd.f32 %v513, 1e-05
        %v546 = vadd.f32 %v514, 1e-05
        %v547 = vadd.f32 %v515, 1e-05
        %v548 = vadd.f32 %v516, 1e-05
        %v549 = vadd.f32 %v517, 1e-05
        %v550 = vadd.f32 %v518, 1e-05
        %v551 = vadd.f32 %v519, 1e-05
        %v552 = vadd.f32 %v520, 1e-05
        %v553 = vadd.f32 %v521, 1e-05
        %v554 = vadd.f32 %v522, 1e-05
        %v555 = vadd.f32 %v523, 1e-05
        %v556 = vadd.f32 %v524, 1e-05
        %v557 = vadd.f32 %v525, 1e-05
        %v558 = vadd.f32 %v526, 1e-05
        %v559 = vadd.f32 %v527, 1e-05
        %v560 = vadd.f32 %v528, 1e-05
        %v561 = vadd.f32 %v529, 1e-05
        %v562 = vadd.f32 %v530, 1e-05
        %v563 = vrsqrt.pop %v531
        %v564 = vrsqrt.pop %v532
        %v565 = vrsqrt.pop %v533
        %v566 = vrsqrt.pop %v534
        %v567 = vrsqrt.pop %v535
        %v568 = vrsqrt.pop %v536
        %v569 = vrsqrt.pop %v537
        %v570 = vrsqrt.pop %v538
        %v571 = vrsqrt.pop %v539
        %v572 = vrsqrt.pop %v540
        %v573 = vrsqrt.pop %v541
        %v574 = vrsqrt.pop %v542
        %v575 = vrsqrt.pop %v543
        %v576 = vrsqrt.pop %v544
        %v577 = vrsqrt.pop %v545
        %v578 = vrsqrt.pop %v546
        %v579 = vrsqrt.pop %v547
        %v580 = vrsqrt.pop %v548
        %v581 = vrsqrt.pop %v549
        %v582 = vrsqrt.pop %v550
        %v583 = vrsqrt.pop %v551
        %v584 = vrsqrt.pop %v552
        %v585 = vrsqrt.pop %v553
        %v586 = vrsqrt.pop %v554
        %v587 = vrsqrt.pop %v555
        %v588 = vrsqrt.pop %v556
        %v589 = vrsqrt.pop %v557
        %v590 = vrsqrt.pop %v558
        %v591 = vrsqrt.pop %v559
        %v592 = vrsqrt.pop %v560
        %v593 = vrsqrt.pop %v561
        %v594 = vrsqrt.pop %v562
        %v595 = vmul.f32 %v371, %v563
        %v596 = vmul.f32 %v372, %v564
        %v597 = vmul.f32 %v373, %v565
        %v598 = vmul.f32 %v374, %v566
        %v599 = vmul.f32 %v375, %v567
        %v600 = vmul.f32 %v376, %v568
        %v601 = vmul.f32 %v377, %v569
        %v602 = vmul.f32 %v378, %v570
        %v603 = vmul.f32 %v379, %v571
        %v604 = vmul.f32 %v380, %v572
        %v605 = vmul.f32 %v381, %v573
        %v606 = vmul.f32 %v382, %v574
        %v607 = vmul.f32 %v383, %v575
        %v608 = vmul.f32 %v384, %v576
        %v609 = vmul.f32 %v385, %v577
        %v610 = vmul.f32 %v386, %v578
        %v611 = vmul.f32 %v387, %v579
        %v612 = vmul.f32 %v388, %v580
        %v613 = vmul.f32 %v389, %v581
        %v614 = vmul.f32 %v390, %v582
        %v615 = vmul.f32 %v391, %v583
        %v616 = vmul.f32 %v392, %v584
        %v617 = vmul.f32 %v393, %v585
        %v618 = vmul.f32 %v394, %v586
        %v619 = vmul.f32 %v395, %v587
        %v620 = vmul.f32 %v396, %v588
        %v621 = vmul.f32 %v397, %v589
        %v622 = vmul.f32 %v398, %v590
        %v623 = vmul.f32 %v399, %v591
        %v624 = vmul.f32 %v400, %v592
        %v625 = vmul.f32 %v401, %v593
        %v626 = vmul.f32 %v402, %v594
        %v627 = vpack.c.bf16 %v596, %v595
        %v628 = vpack.c.bf16 %v598, %v597
        %v629 = vpack.c.bf16 %v600, %v599
        %v630 = vpack.c.bf16 %v602, %v601
        %v631 = vpack.c.bf16 %v604, %v603
        %v632 = vpack.c.bf16 %v606, %v605
        %v633 = vpack.c.bf16 %v608, %v607
        %v634 = vpack.c.bf16 %v610, %v609
        %v635 = vpack.c.bf16 %v612, %v611
        %v636 = vpack.c.bf16 %v614, %v613
        %v637 = vpack.c.bf16 %v616, %v615
        %v638 = vpack.c.bf16 %v618, %v617
        %v639 = vpack.c.bf16 %v620, %v619
        %v640 = vpack.c.bf16 %v622, %v621
        %v641 = vpack.c.bf16 %v624, %v623
        %v642 = vpack.c.bf16 %v626, %v625
        %v643 = vld [vmem:[#allocation5] sm:$0xf]
        %v644 = vld [vmem:[#allocation5 + $0x4] sm:$0xf]
        %v645 = vld [vmem:[#allocation5 + $0x8] sm:$0xf]
        %v646 = vld [vmem:[#allocation5 + $0xc] sm:$0xf]
        %v647 = vld [vmem:[#allocation5 + $0x10] sm:$0xf]
        %v648 = vld [vmem:[#allocation5 + $0x14] sm:$0xf]
        %v649 = vld [vmem:[#allocation5 + $0x18] sm:$0xf]
        %v650 = vld [vmem:[#allocation5 + $0x1c] sm:$0xf]
        %v651 = vld [vmem:[#allocation5 + $0x20] sm:$0xf]
        %v652 = vld [vmem:[#allocation5 + $0x24] sm:$0xf]
        %v653 = vld [vmem:[#allocation5 + $0x28] sm:$0xf]
        %v654 = vld [vmem:[#allocation5 + $0x2c] sm:$0xf]
        %v655 = vld [vmem:[#allocation5 + $0x30] sm:$0xf]
        %v656 = vld [vmem:[#allocation5 + $0x34] sm:$0xf]
        %v657 = vld [vmem:[#allocation5 + $0x38] sm:$0xf]
        %v658 = vld [vmem:[#allocation5 + $0x3c] sm:$0xf]
        %v659 = vld [vmem:[%s239] sm:$0x1]
        %v661 = vlaneseq
        %v662 = vshrl.u32 %v661, 7
        %v663 = vsub.s32 0, %v662
        %v664 = vrot.slane %v659, %v663
        %v682 = vunpack.c.l.b16 %v643
        %v683 = vunpack.c.l.b16 %v644
        %v684 = vunpack.c.l.b16 %v645
        %v685 = vunpack.c.l.b16 %v646
        %v686 = vunpack.c.l.b16 %v647
        %v687 = vunpack.c.l.b16 %v648
        %v688 = vunpack.c.l.b16 %v649
        %v689 = vunpack.c.l.b16 %v650
        %v690 = vunpack.c.l.b16 %v651
        %v691 = vunpack.c.l.b16 %v652
        %v692 = vunpack.c.l.b16 %v653
        %v693 = vunpack.c.l.b16 %v654
        %v694 = vunpack.c.l.b16 %v655
        %v695 = vunpack.c.l.b16 %v656
        %v696 = vunpack.c.l.b16 %v657
        %v697 = vunpack.c.l.b16 %v658
        %v698 = vpack.c.b16 %v683, %v682
        %v699 = vpack.c.b16 %v685, %v684
        %v700 = vpack.c.b16 %v687, %v686
        %v701 = vpack.c.b16 %v689, %v688
        %v702 = vpack.c.b16 %v691, %v690
        %v703 = vpack.c.b16 %v693, %v692
        %v704 = vpack.c.b16 %v695, %v694
        %v705 = vpack.c.b16 %v697, %v696
        %714 = vmatprep.subr.bf16.mxu0 0
        %715 = vmatpush1.bf16.msra.mxu0 %v698
        %716 = vmatprep.subr.bf16.mxu0 0
        %717 = vmatpush1.bf16.msra.mxu0 %v699
        %718 = vmatprep.subr.bf16.mxu0 0
        %719 = vmatpush1.bf16.msra.mxu0 %v700
        %720 = vmatprep.subr.bf16.mxu0 0
        %721 = vmatpush1.bf16.msra.mxu0 %v701
        %722 = vmatprep.subr.bf16.mxu0 0
        %723 = vmatpush1.bf16.msra.mxu0 %v702
        %724 = vmatprep.subr.bf16.mxu0 0
        %725 = vmatpush1.bf16.msra.mxu0 %v703
        %726 = vmatprep.subr.bf16.mxu0 0
        %727 = vmatpush1.bf16.msra.mxu0 %v704
        %728 = vmatprep.subr.bf16.mxu0 0
        %729 = vmatpush1.bf16.msra.mxu0 %v705
        %730 = vmatprep.subr.bf16.mxu0 0
        %731 = vmatpush1.bf16.msra.mxu0 0
        %732 = vmatprep.subr.bf16.mxu0 0
        %733 = vmatpush1.bf16.msra.mxu0 0
        %734 = vmatprep.subr.bf16.mxu0 0
        %735 = vmatpush1.bf16.msra.mxu0 0
        %736 = vmatprep.subr.bf16.mxu0 0
        %737 = vmatpush1.bf16.msra.mxu0 0
        %738 = vmatprep.subr.bf16.mxu0 0
        %739 = vmatpush1.bf16.msra.mxu0 0
        %740 = vmatprep.subr.bf16.mxu0 0
        %741 = vmatpush1.bf16.msra.mxu0 0
        %742 = vmatprep.subr.bf16.mxu0 0
        %743 = vmatpush1.bf16.msra.mxu0 0
        %744 = vmatprep.subr.bf16.mxu0 0
        %745 = vmatpush1.bf16.msra.mxu0 0
        %746 = vmatprep.mubr.bf16.mxu0 0
        %747 = vmatmul.mubr.bf16.gmra.mrb[0].mxu0 %v627
        %v748 = vpop.f32.mrb[0].mxu0
        %v749 = vadd.f32 %v664, %v748
        %v750 = vpop.f32.mrb[0].mxu0
        %v751 = vpop.f32.mrb[0].mxu0
        %v752 = vadd.f32 %v664, %v751
        %v753 = vpop.f32.mrb[0].mxu0
        %754 = vmatprep.mubr.bf16.mxu0 0
        %755 = vmatmul.mubr.bf16.gmra.mrb[0].mxu0 %v628
        %v756 = vpop.f32.mrb[0].mxu0
        %v757 = vadd.f32 %v664, %v756
        %v758 = vpop.f32.mrb[0].mxu0
        %v759 = vpop.f32.mrb[0].mxu0
        %v760 = vadd.f32 %v664, %v759
        %v761 = vpop.f32.mrb[0].mxu0
        %762 = vmatprep.mubr.bf16.mxu0 0
        %763 = vmatmul.mubr.bf16.gmra.mrb[0].mxu0 %v629
        %v764 = vpop.f32.mrb[0].mxu0
        %v765 = vadd.f32 %v664, %v764
        %v766 = vpop.f32.mrb[0].mxu0
        %v767 = vpop.f32.mrb[0].mxu0
        %v768 = vadd.f32 %v664, %v767
        %v769 = vpop.f32.mrb[0].mxu0
        %770 = vmatprep.mubr.bf16.mxu0 0
        %771 = vmatmul.mubr.bf16.gmra.mrb[0].mxu0 %v630
        %v772 = vpop.f32.mrb[0].mxu0
        %v773 = vadd.f32 %v664, %v772
        %v774 = vpop.f32.mrb[0].mxu0
        %v775 = vpop.f32.mrb[0].mxu0
        %v776 = vadd.f32 %v664, %v775
        %v777 = vpop.f32.mrb[0].mxu0
        %778 = vmatprep.mubr.bf16.mxu0 0
        %779 = vmatmul.mubr.bf16.gmra.mrb[0].mxu0 %v631
        %v780 = vpop.f32.mrb[0].mxu0
        %v781 = vadd.f32 %v664, %v780
        %v782 = vpop.f32.mrb[0].mxu0
        %v783 = vpop.f32.mrb[0].mxu0
        %v784 = vadd.f32 %v664, %v783
        %v785 = vpop.f32.mrb[0].mxu0
        %786 = vmatprep.mubr.bf16.mxu0 0
        %787 = vmatmul.mubr.bf16.gmra.mrb[0].mxu0 %v632
        %v788 = vpop.f32.mrb[0].mxu0
        %v789 = vadd.f32 %v664, %v788
        %v790 = vpop.f32.mrb[0].mxu0
        %v791 = vpop.f32.mrb[0].mxu0
        %v792 = vadd.f32 %v664, %v791
        %v793 = vpop.f32.mrb[0].mxu0
        %794 = vmatprep.mubr.bf16.mxu0 0
        %795 = vmatmul.mubr.bf16.gmra.mrb[0].mxu0 %v633
        %v796 = vpop.f32.mrb[0].mxu0
        %v797 = vadd.f32 %v664, %v796
        %v798 = vpop.f32.mrb[0].mxu0
        %v799 = vpop.f32.mrb[0].mxu0
        %v800 = vadd.f32 %v664, %v799
        %v801 = vpop.f32.mrb[0].mxu0
        %802 = vmatprep.mubr.bf16.mxu0 0
        %803 = vmatmul.mubr.bf16.gmra.mrb[0].mxu0 %v634
        %v804 = vpop.f32.mrb[0].mxu0
        %v805 = vadd.f32 %v664, %v804
        %v806 = vpop.f32.mrb[0].mxu0
        %v807 = vpop.f32.mrb[0].mxu0
        %v808 = vadd.f32 %v664, %v807
        %v809 = vpop.f32.mrb[0].mxu0
        %810 = vmatprep.mubr.bf16.mxu0 0
        %811 = vmatmul.mubr.bf16.gmra.mrb[0].mxu0 %v635
        %v812 = vpop.f32.mrb[0].mxu0
        %v813 = vadd.f32 %v664, %v812
        %v814 = vpop.f32.mrb[0].mxu0
        %v815 = vpop.f32.mrb[0].mxu0
        %v816 = vadd.f32 %v664, %v815
        %v817 = vpop.f32.mrb[0].mxu0
        %818 = vmatprep.mubr.bf16.mxu0 0
        %819 = vmatmul.mubr.bf16.gmra.mrb[0].mxu0 %v636
        %v820 = vpop.f32.mrb[0].mxu0
        %v821 = vadd.f32 %v664, %v820
        %v822 = vpop.f32.mrb[0].mxu0
        %v823 = vpop.f32.mrb[0].mxu0
        %v824 = vadd.f32 %v664, %v823
        %v825 = vpop.f32.mrb[0].mxu0
        %826 = vmatprep.mubr.bf16.mxu0 0
        %827 = vmatmul.mubr.bf16.gmra.mrb[0].mxu0 %v637
        %v828 = vpop.f32.mrb[0].mxu0
        %v829 = vadd.f32 %v664, %v828
        %v830 = vpop.f32.mrb[0].mxu0
        %v831 = vpop.f32.mrb[0].mxu0
        %v832 = vadd.f32 %v664, %v831
        %v833 = vpop.f32.mrb[0].mxu0
        %834 = vmatprep.mubr.bf16.mxu0 0
        %835 = vmatmul.mubr.bf16.gmra.mrb[0].mxu0 %v638
        %v836 = vpop.f32.mrb[0].mxu0
        %v837 = vadd.f32 %v664, %v836
        %v838 = vpop.f32.mrb[0].mxu0
        %v839 = vpop.f32.mrb[0].mxu0
        %v840 = vadd.f32 %v664, %v839
        %v841 = vpop.f32.mrb[0].mxu0
        %842 = vmatprep.mubr.bf16.mxu0 0
        %843 = vmatmul.mubr.bf16.gmra.mrb[0].mxu0 %v639
        %v844 = vpop.f32.mrb[0].mxu0
        %v845 = vadd.f32 %v664, %v844
        %v846 = vpop.f32.mrb[0].mxu0
        %v847 = vpop.f32.mrb[0].mxu0
        %v848 = vadd.f32 %v664, %v847
        %v849 = vpop.f32.mrb[0].mxu0
        %850 = vmatprep.mubr.bf16.mxu0 0
        %851 = vmatmul.mubr.bf16.gmra.mrb[0].mxu0 %v640
        %v852 = vpop.f32.mrb[0].mxu0
        %v853 = vadd.f32 %v664, %v852
        %v854 = vpop.f32.mrb[0].mxu0
        %v855 = vpop.f32.mrb[0].mxu0
        %v856 = vadd.f32 %v664, %v855
        %v857 = vpop.f32.mrb[0].mxu0
        %858 = vmatprep.mubr.bf16.mxu0 0
        %859 = vmatmul.mubr.bf16.gmra.mrb[0].mxu0 %v641
        %v860 = vpop.f32.mrb[0].mxu0
        %v861 = vadd.f32 %v664, %v860
        %v862 = vpop.f32.mrb[0].mxu0
        %v863 = vpop.f32.mrb[0].mxu0
        %v864 = vadd.f32 %v664, %v863
        %v865 = vpop.f32.mrb[0].mxu0
        %866 = vmatprep.mubr.bf16.mxu0 0
        %867 = vmatmul.mubr.bf16.gmra.mrb[0].mxu0 %v642
        %v868 = vpop.f32.mrb[0].mxu0
        %v869 = vadd.f32 %v664, %v868
        %v870 = vpop.f32.mrb[0].mxu0
        %v871 = vpop.f32.mrb[0].mxu0
        %v872 = vadd.f32 %v664, %v871
        %v873 = vpop.f32.mrb[0].mxu0
        %874 = vdwg.mxu0
        %875 = vst [vmem:[%s235] sm:$0xff] %v749
        %876 = vst [vmem:[%s235 + $0x8] sm:$0xff] %v752
        %877 = vst [vmem:[%s235 + $0x10] sm:$0xff] %v757
        %878 = vst [vmem:[%s235 + $0x18] sm:$0xff] %v760
        %879 = vst [vmem:[%s235 + $0x20] sm:$0xff] %v765
        %880 = vst [vmem:[%s235 + $0x28] sm:$0xff] %v768
        %881 = vst [vmem:[%s235 + $0x30] sm:$0xff] %v773
        %882 = vst [vmem:[%s235 + $0x38] sm:$0xff] %v776
        %883 = vst [vmem:[%s235 + $0x40] sm:$0xff] %v781
        %884 = vst [vmem:[%s235 + $0x48] sm:$0xff] %v784
        %885 = vst [vmem:[%s235 + $0x50] sm:$0xff] %v789
        %886 = vst [vmem:[%s235 + $0x58] sm:$0xff] %v792
        %887 = vst [vmem:[%s235 + $0x60] sm:$0xff] %v797
        %888 = vst [vmem:[%s235 + $0x68] sm:$0xff] %v800
        %889 = vst [vmem:[%s235 + $0x70] sm:$0xff] %v805
        %890 = vst [vmem:[%s235 + $0x78] sm:$0xff] %v808
        %891 = vst [vmem:[%s235 + $0x80] sm:$0xff] %v813
        %892 = vst [vmem:[%s235 + $0x88] sm:$0xff] %v816
        %893 = vst [vmem:[%s235 + $0x90] sm:$0xff] %v821
        %894 = vst [vmem:[%s235 + $0x98] sm:$0xff] %v824
        %895 = vst [vmem:[%s235 + $0xa0] sm:$0xff] %v829
        %896 = vst [vmem:[%s235 + $0xa8] sm:$0xff] %v832
        %897 = vst [vmem:[%s235 + $0xb0] sm:$0xff] %v837
        %898 = vst [vmem:[%s235 + $0xb8] sm:$0xff] %v840
        %899 = vst [vmem:[%s235 + $0xc0] sm:$0xff] %v845
        %900 = vst [vmem:[%s235 + $0xc8] sm:$0xff] %v848
        %901 = vst [vmem:[%s235 + $0xd0] sm:$0xff] %v853
        %902 = vst [vmem:[%s235 + $0xd8] sm:$0xff] %v856
        %903 = vst [vmem:[%s235 + $0xe0] sm:$0xff] %v861
        %904 = vst [vmem:[%s235 + $0xe8] sm:$0xff] %v864
        %905 = vst [vmem:[%s235 + $0xf0] sm:$0xff] %v869
        %906 = vst [vmem:[%s235 + $0xf8] sm:$0xff] %v872
        %s907 = sand.u32 %s121, 1
        %s908 = scalar_lea.sflag [#allocation4], %s907
        %s909 = sand.u32 %s121, 1
        %s910 = smul.addr %s909, 256
        %s911 = scalar_lea.vmem [#allocation7], %s910
        // Predicated region
        $region41: #{tpu_custom_call.1} parent=31 // pred_check
          %p912 = pneg %p131
        $region42: #{tpu_custom_call.1} parent=31 // pred_check_branch
          %914 = sbr.rel (%p912) target = $region44
        $region43: #{tpu_custom_call.1} parent=31 // pred_region
          %s915 = smul.u32 32, %s25
          %s917 = ssub.s32 4096, 4096
          %918 = vsyncadd %s908, %s917
          %s919 = sadd.s32 %s26, %s915
          %s920 = smul.addr %s919, 128
          %s921 = scalar_lea.hbm %s3, %s920
          %s922 = sshll.u32 %s911, 4
          %s923 = int_to_ptr.vmem [resolvable:$true] %s922
          %928 = dma.vmem_to_hbm [thread:$0]  %s923, 4096, %s921, %s908, 128, 128, 8
        $region44: #{tpu_custom_call.1} parent=31 // pred_fallthru
          _
      $region32: #{tpu_custom_call.1} parent=5 // pred_fallthru
        _
      %p929 = scmp.le.s32.totalorder 2, %s16
      // Predicated region
      $region45: #{tpu_custom_call.1} parent=5 // pred_check
        %p930 = pneg %p929
      $region46: #{tpu_custom_call.1} parent=5 // pred_check_branch
        %932 = sbr.rel (%p930) target = $region48
      $region47: #{tpu_custom_call.1} parent=5 // pred_region
        %s933 = ssub.s32 %s16, 2
        // Predicated region
        $region49: #{tpu_custom_call.1} parent=47 // pred_check
          %p934 = pneg %p137
        $region50: #{tpu_custom_call.1} parent=47 // pred_check_branch
          %936 = sbr.rel (%p934) target = $region52
        $region51: #{tpu_custom_call.1} parent=47 // pred_region
          %s937 = sand.u32 %s122, 1
          %s938 = scalar_lea.sflag [#allocation4], %s937
          %s939 = sand.u32 %s122, 1
          %s940 = smul.addr %s939, 256
          %s941 = scalar_lea.vmem [#allocation7], %s940
          %942 = dma.done %s938, 4096
        $region52: #{tpu_custom_call.1} parent=47 // pred_fallthru
          _
      $region48: #{tpu_custom_call.1} parent=5 // pred_fallthru
        _
    $region6: #{tpu_custom_call.1} parent=1 // loop_footer
      %s20 = sadd.s32 1, %s16
    $region7: #{tpu_custom_call.1} parent=1 // loop_footer_branch
      %15 = sbr.rel target = $region3
    $region8: #{tpu_custom_call.1} parent=1 // loop_exit
      _
    %943 = vsyncpa [#allocation3], 1
    %s944 = scalar_lea.sflag [#allocation3], 1
    %945 = vsyncpa %s944, 1
    %946 = vsyncpa [#allocation6], 1
    %947 = vsyncpa [#allocation4], 1
    %s948 = scalar_lea.sflag [#allocation4], 1
    %949 = vsyncpa %s948, 1

</llo_original>
